<compile_context>
chip_gen: v5e
topology: v5e:2x2
jax: 0.10.0
libtpu: 0.0.40
codegen_flags: <defaults>
</compile_context>

<pallas_src>
import functools

import jax
import jax.numpy as jnp
from jax.experimental import pallas as pl
from jax.experimental.pallas import tpu as pltpu


def _ext_attn_kernel(x_ref, wk_ref, wv_ref, o_ref):
    # x_ref:  (1, C_in, T)  pixels on lanes, channels on sublanes
    # wk_ref: (S, C_in)     wv_ref: (C_out, S)     o_ref: (1, C_out, T)
    x = x_ref[0]            # native dtype straight into the MXU (no blanket upcast)
    wk = wk_ref[...]
    wv = wv_ref[...]

    # Attention logits per pixel over the S "external keys": (S, T), f32 acc.
    a = jnp.dot(wk, x, preferred_element_type=jnp.float32)

    # Softmax over S (== dim=1 of the PyTorch (B, S, HW) view); S is the
    # sublane axis here.  Keep all softmax arithmetic in f32.
    a = a - jnp.max(a, axis=0, keepdims=True)        # XLU reduce (stability)
    e = jnp.exp(a)                                   # EUP
    denom = jnp.sum(e, axis=0, keepdims=True)        # XLU reduce
    p = e * pl.reciprocal(denom, approx=True)        # vrcp on EUP, VALU stays free

    o = jnp.dot(wv, p.astype(wv.dtype), preferred_element_type=jnp.float32)
    o_ref[0] = o.astype(o_ref.dtype)


def _pick_tile_hw(hw):
    # Largest lane-dense tile (multiple of 128) that divides H*W, capped at
    # 2048 (big enough to amortize the ~0.35 us per-step overhead while
    # keeping the VMEM footprint tiny).
    for t in (2048, 1024, 512, 256, 128):
        if hw % t == 0:
            return t
    return hw  # full-extent block is always legal (possibly lane-masked)


@functools.partial(jax.jit, static_argnames=("tile_hw",))
def external_attention(x_nchw, wk_conv, wv_conv, *, tile_hw=None):
    """x_nchw: (B, C_in, H, W)
       wk_conv: (S, C_in, 1, 1)   (PyTorch Conv2d weight layout)
       wv_conv: (C_out, S, 1, 1)
    """
    B, C_in, H, W = x_nchw.shape
    S = wk_conv.shape[0]
    C_out = wv_conv.shape[0]
    HW = H * W
    if tile_hw is None:
        tile_hw = _pick_tile_hw(HW)
    assert HW % tile_hw == 0, "H*W must be divisible by tile_hw"

    # Pure reshape of NCHW -- no transpose, no extra HBM traffic.
    x_flat = x_nchw.reshape(B, C_in, HW)
    wk = wk_conv[:, :, 0, 0]          # (S, C_in)
    wv = wv_conv[:, :, 0, 0]          # (C_out, S)

    n_hw = HW // tile_hw
    db = x_nchw.dtype.itemsize
    # HBM-bound kernel: tell XLA the truth so it schedules around it properly.
    cost = pl.CostEstimate(
        flops=2 * B * HW * S * (C_in + C_out),
        transcendentals=B * HW * (S + 1),            # exp + reciprocal
        bytes_accessed=B * HW * (C_in + C_out) * db
        + (S * C_in + C_out * S) * wk_conv.dtype.itemsize,
    )

    out_flat = pl.pallas_call(
        _ext_attn_kernel,
        out_shape=jax.ShapeDtypeStruct((B, C_out, HW), x_nchw.dtype),
        grid_spec=pltpu.PrefetchScalarGridSpec(
            num_scalar_prefetch=0,
            grid=(B, n_hw),
            in_specs=[
                pl.BlockSpec((1, C_in, tile_hw), lambda b, j: (b, 0, j)),
                pl.BlockSpec((S, C_in), lambda b, j: (0, 0)),      # resident weights
                pl.BlockSpec((C_out, S), lambda b, j: (0, 0)),     # resident weights
            ],
            out_specs=pl.BlockSpec((1, C_out, tile_hw), lambda b, j: (b, 0, j)),
        ),
        compiler_params=pltpu.CompilerParams(
            dimension_semantics=("parallel", "parallel"),
        ),
        cost_estimate=cost,
    )(x_flat, wk, wv)

    return out_flat.reshape(B, C_out, H, W)


def _reference(x_nchw, wk_conv, wv_conv):
    """Pure-JAX reference mirroring the PyTorch forward."""
    B, C_in, H, W = x_nchw.shape
    S = wk_conv.shape[0]
    wk = wk_conv[:, :, 0, 0]          # (S, C_in)
    wv = wv_conv[:, :, 0, 0]          # (C_out, S)
    attn = jnp.einsum("bchw,sc->bshw", x_nchw, wk).reshape(B, S, H * W)
    attn = jax.nn.softmax(attn, axis=1)
    attn = attn.reshape(B, S, H, W)
    return jnp.einsum("bshw,os->bohw", attn, wv)


if __name__ == "__main__":
    B, C_in, C_out, H, W, S = 2, 4, 4, 16, 16, 64

    key = jax.random.PRNGKey(0)
    kx, kk, kv = jax.random.split(key, 3)

    x = jax.random.normal(kx, (B, C_in, H, W), dtype=jnp.float32)
    # kaiming_normal_(mode='fan_out'): std = sqrt(2 / fan_out), fan_out = out_ch*kH*kW
    wk_conv = jax.random.normal(kk, (S, C_in, 1, 1), dtype=jnp.float32) * jnp.sqrt(2.0 / S)
    wv_conv = jax.random.normal(kv, (C_out, S, 1, 1), dtype=jnp.float32) * jnp.sqrt(2.0 / C_out)

    out = external_attention(x, wk_conv, wv_conv)
    out = jax.block_until_ready(out)

    ref = _reference(x, wk_conv, wv_conv)
    assert out.shape == (B, C_out, H, W)
    # approx vrcp in the softmax denominator has ~1e-4 relative error; all other
    # arithmetic is f32, so a 2e-3 tolerance is comfortable.
    assert jnp.allclose(out, ref, atol=2e-3, rtol=2e-3), "mismatch vs reference"

    print("KERNEL_OK")
</pallas_src>

<mosaic_0001>
module attributes {stable_mosaic.version = 11 : i64} {
  func.func @_ext_attn_kernel(%arg0: i32, %arg1: i32, %arg2: memref<1x4x256xf32, #tpu.memory_space<vmem>>, %arg3: memref<64x4xf32, #tpu.memory_space<vmem>>, %arg4: memref<4x64xf32, #tpu.memory_space<vmem>>, %arg5: memref<1x4x256xf32, #tpu.memory_space<vmem>>) attributes {dimension_semantics = [#tpu.dimension_semantics<parallel>, #tpu.dimension_semantics<parallel>], iteration_bounds = array<i64: 2, 1>, scalar_prefetch = 0 : i64, scratch_operands = 0 : i64, tpu.core_type = #tpu.core_type<tc>, window_params = [{transform_indices = @transform_0, window_bounds = array<i64: 1, 4, 256>}, {pipeline_mode = #tpu.pipeline_mode<synchronous>, transform_indices = @transform_1, window_bounds = array<i64: 64, 4>}, {pipeline_mode = #tpu.pipeline_mode<synchronous>, transform_indices = @transform_2, window_bounds = array<i64: 4, 64>}, {transform_indices = @transform_3, window_bounds = array<i64: 1, 4, 256>}]} {
    %c0 = arith.constant 0 : index
    %c0_0 = arith.constant 0 : index
    %c0_1 = arith.constant 0 : index
    %0 = vector.load %arg2[%c0, %c0_0, %c0_1] : memref<1x4x256xf32, #tpu.memory_space<vmem>>, vector<1x4x256xf32>
    %1 = vector.shape_cast %0 : vector<1x4x256xf32> to vector<4x256xf32>
    %c0_2 = arith.constant 0 : index
    %c0_3 = arith.constant 0 : index
    %2 = vector.load %arg3[%c0_2, %c0_3] : memref<64x4xf32, #tpu.memory_space<vmem>>, vector<64x4xf32>
    %c0_4 = arith.constant 0 : index
    %c0_5 = arith.constant 0 : index
    %3 = vector.load %arg4[%c0_4, %c0_5] : memref<4x64xf32, #tpu.memory_space<vmem>>, vector<4x64xf32>
    %cst = arith.constant dense<0.000000e+00> : vector<64x256xf32>
    %4 = tpu.matmul %2, %1, %cst {dimension_numbers = #tpu.dot_dimension_numbers<[1], [0], [0], [1], [0, 0, 1, 1], [], []>} : vector<64x4xf32>, vector<4x256xf32>, vector<64x256xf32> -> vector<64x256xf32>
    %cst_6 = arith.constant dense<0xFF800000> : vector<256xf32>
    %5 = vector.multi_reduction <maximumf>, %4, %cst_6 [0] : vector<64x256xf32> to vector<256xf32>
    %6 = vector.shape_cast %5 : vector<256xf32> to vector<1x256xf32>
    %7 = vector.broadcast %6 : vector<1x256xf32> to vector<64x256xf32>
    %8 = arith.subf %4, %7 : vector<64x256xf32>
    %9 = math.exp %8 : vector<64x256xf32>
    %cst_7 = arith.constant dense<0.000000e+00> : vector<256xf32>
    %10 = vector.multi_reduction <add>, %9, %cst_7 [0] : vector<64x256xf32> to vector<256xf32>
    %11 = vector.shape_cast %10 : vector<256xf32> to vector<1x256xf32>
    %12 = tpu.reciprocal %11 {approx = true} : vector<1x256xf32> -> vector<1x256xf32>
    %13 = vector.broadcast %12 : vector<1x256xf32> to vector<64x256xf32>
    %14 = arith.mulf %9, %13 : vector<64x256xf32>
    %cst_8 = arith.constant dense<0.000000e+00> : vector<4x256xf32>
    %15 = tpu.matmul %3, %14, %cst_8 {dimension_numbers = #tpu.dot_dimension_numbers<[1], [0], [0], [1], [0, 0, 1, 1], [], []>} : vector<4x64xf32>, vector<64x256xf32>, vector<4x256xf32> -> vector<4x256xf32>
    %c0_9 = arith.constant 0 : index
    %c0_10 = arith.constant 0 : index
    %c0_11 = arith.constant 0 : index
    %16 = vector.load %arg5[%c0_9, %c0_10, %c0_11] : memref<1x4x256xf32, #tpu.memory_space<vmem>>, vector<1x4x256xf32>
    %17 = vector.shape_cast %16 : vector<1x4x256xf32> to vector<4x256xf32>
    %18 = vector.shape_cast %15 : vector<4x256xf32> to vector<1x4x256xf32>
    tpu.vector_store %arg5[%c0_9, %c0_10, %c0_11], %18 {strides = array<i32>} : memref<1x4x256xf32, #tpu.memory_space<vmem>>, vector<1x4x256xf32>,
    return
  }
  func.func @transform_0(%arg0: i32, %arg1: i32) -> (i32, i32, i32) {
    %c0_i32 = arith.constant 0 : i32
    %c0_i32_0 = arith.constant 0 : i32
    return %arg0, %c0_i32, %arg1 : i32, i32, i32
  }
  func.func @transform_1(%arg0: i32, %arg1: i32) -> (i32, i32) {
    %c0_i32 = arith.constant 0 : i32
    %c0_i32_0 = arith.constant 0 : i32
    %c0_i32_1 = arith.constant 0 : i32
    return %c0_i32, %c0_i32_0 : i32, i32
  }
  func.func @transform_2(%arg0: i32, %arg1: i32) -> (i32, i32) {
    %c0_i32 = arith.constant 0 : i32
    %c0_i32_0 = arith.constant 0 : i32
    %c0_i32_1 = arith.constant 0 : i32
    return %c0_i32, %c0_i32_0 : i32, i32
  }
  func.func @transform_3(%arg0: i32, %arg1: i32) -> (i32, i32, i32) {
    %c0_i32 = arith.constant 0 : i32
    %c0_i32_0 = arith.constant 0 : i32
    return %arg0, %c0_i32, %arg1 : i32, i32, i32
  }
}

</mosaic_0001>

<llo_original>
// kernel: external_attention.1
$region0: #{external_attention.1}
  #allocation0 [shape = 'u32[]', space=smem, size = 0x4, offset = 0x4, fixed_abs, tag = 'smem constant byte address 0x4 - core index']
  #allocation1 [shape = 'u32[72,128]{1,0:T(1,128)}', space=vmem, size = 0x9000, scoped, tag = 'internal scratch']
  %s0 = inlined_call_operand.vmem [shape: f32[2,4,256], index: 0, kind: input, shape index: {}]
  %s1 = inlined_call_operand.vmem [shape: f32[64,4], index: 1, kind: input, shape index: {}]
  %s2 = inlined_call_operand.vmem [shape: f32[4,64], index: 2, kind: input, shape index: {}]
  %s3 = inlined_call_operand.vmem [shape: f32[2,4,256], index: 3, kind: output, shape index: {}]
  %s4 = sld [smem:[#allocation0]]
  $region45: #{external_attention.1} parent=0
    _
  %s6 = ssub.s32 1, %s4
  %s7 = scalar_select 0, %s6, %s4
  loop: start=0, step=1, limit=4
  $region2: #{external_attention.1} parent=0 // loop_pre_header
    _
  $region3: #{external_attention.1} parent=0 // loop_header
    %s9 = sphi 0, %s13
    %p10 = scmp.ge.s32.totalorder %s9, 4
    %s16 = sphi 0, %s28
    %s17 = sphi 0, %s24
    %s18 = sphi 0, %s16
    %s19 = sphi 0, %s17
    %s20 = sphi 0, %s18
    %s21 = sphi 0, %s19
    %s33 = sphi 0, %s35
    %s36 = sphi 0, %s33
    %s37 = sphi 0, %s36
    %s53 = sphi 0, %s37
    %s57 = sphi 0, %s57
    %s59 = sphi 0, %s57
    %s60 = sphi 0, %s59
    %s74 = sphi 0, %s60
    %s78 = sphi 0, %s78
    %s80 = sphi 0, %s78
    %s81 = sphi 0, %s80
    %s95 = sphi 0, %s81
    %s103 = sphi 0, %s105
    %s106 = sphi 0, %s103
    %s107 = sphi 0, %s106
    %s123 = sphi 0, %s107
  $region4: #{external_attention.1} parent=0 // loop_header_branch
    %12 = sbr.rel (%p10) target = $region8
  $region5: #{external_attention.1} parent=0 // loop_body
    %s14 = ssub.s32 %s9, 1
    %s15 = ssub.s32 %s9, 2
    %s22 = sadd.s32 1, %s17
    %p23 = scmp.ge.s32.totalorder %s22, 1
    %s24 = scalar_select %p23, 0, %s22
    %s25 = sadd.s32 1, %s16
    %s26 = scalar_select %p23, %s25, %s16
    %p27 = scmp.ge.s32.totalorder %s26, 2
    %s28 = scalar_select %p27, 0, %s26
    %s29 = ssub.s32 %s16, %s28
    %s30 = ssub.s32 %s17, %s24
    %s31 = sor.u32 %s29, %s30
    %p32 = scmp.eq.s32.totalorder %s31, 0
    %s34 = sadd.s32 %s33, 1
    %s35 = scalar_select %p32, %s33, %s34
    %p38 = pneg %p32
    %p39 = scmp.eq.s32.totalorder %s9, 1
    %p40 = por %p38, %p39
    %p41 = scmp.ne.s32.totalorder %s33, %s36
    %p42 = scmp.eq.s32.totalorder %s9, 0
    %p43 = por %p41, %p42
    %p44 = scmp.ne.s32.totalorder %s33, %s36
    %p45 = scmp.eq.s32.totalorder %s14, 1
    %p46 = por %p44, %p45
    %p47 = scmp.ne.s32.totalorder %s36, %s37
    %p48 = scmp.eq.s32.totalorder %s14, 0
    %p49 = por %p47, %p48
    %p50 = scmp.ne.s32.totalorder %s36, %s37
    %p51 = scmp.eq.s32.totalorder %s15, 1
    %p52 = por %p50, %p51
    %p54 = scmp.ne.s32.totalorder %s37, %s53
    %p55 = scmp.eq.s32.totalorder %s15, 0
    %p56 = por %p54, %p55
    %s58 = sadd.s32 %s57, 1
    %p61 = scmp.eq.s32.totalorder %s9, 1
    %p62 = scmp.ne.s32.totalorder %s57, %s59
    %p63 = scmp.eq.s32.totalorder %s9, 0
    %p64 = por %p62, %p63
    %p65 = scmp.ne.s32.totalorder %s57, %s59
    %p66 = scmp.eq.s32.totalorder %s14, 1
    %p67 = por %p65, %p66
    %p68 = scmp.ne.s32.totalorder %s59, %s60
    %p69 = scmp.eq.s32.totalorder %s14, 0
    %p70 = por %p68, %p69
    %p71 = scmp.ne.s32.totalorder %s59, %s60
    %p72 = scmp.eq.s32.totalorder %s15, 1
    %p73 = por %p71, %p72
    %p75 = scmp.ne.s32.totalorder %s60, %s74
    %p76 = scmp.eq.s32.totalorder %s15, 0
    %p77 = por %p75, %p76
    %s79 = sadd.s32 %s78, 1
    %p82 = scmp.eq.s32.totalorder %s9, 1
    %p83 = scmp.ne.s32.totalorder %s78, %s80
    %p84 = scmp.eq.s32.totalorder %s9, 0
    %p85 = por %p83, %p84
    %p86 = scmp.ne.s32.totalorder %s78, %s80
    %p87 = scmp.eq.s32.totalorder %s14, 1
    %p88 = por %p86, %p87
    %p89 = scmp.ne.s32.totalorder %s80, %s81
    %p90 = scmp.eq.s32.totalorder %s14, 0
    %p91 = por %p89, %p90
    %p92 = scmp.ne.s32.totalorder %s80, %s81
    %p93 = scmp.eq.s32.totalorder %s15, 1
    %p94 = por %p92, %p93
    %p96 = scmp.ne.s32.totalorder %s81, %s95
    %p97 = scmp.eq.s32.totalorder %s15, 0
    %p98 = por %p96, %p97
    %s99 = ssub.s32 %s16, %s28
    %s100 = ssub.s32 %s17, %s24
    %s101 = sor.u32 %s99, %s100
    %p102 = scmp.eq.s32.totalorder %s101, 0
    %s104 = sadd.s32 %s103, 1
    %s105 = scalar_select %p102, %s103, %s104
    %p108 = pneg %p102
    %p109 = scmp.eq.s32.totalorder %s9, 1
    %p110 = por %p108, %p109
    %p111 = scmp.ne.s32.totalorder %s103, %s106
    %p112 = scmp.eq.s32.totalorder %s9, 0
    %p113 = por %p111, %p112
    %p114 = scmp.ne.s32.totalorder %s103, %s106
    %p115 = scmp.eq.s32.totalorder %s14, 1
    %p116 = por %p114, %p115
    %p117 = scmp.ne.s32.totalorder %s106, %s107
    %p118 = scmp.eq.s32.totalorder %s14, 0
    %p119 = por %p117, %p118
    %p120 = scmp.ne.s32.totalorder %s106, %s107
    %p121 = scmp.eq.s32.totalorder %s15, 1
    %p122 = por %p120, %p121
    %p124 = scmp.ne.s32.totalorder %s107, %s123
    %p125 = scmp.eq.s32.totalorder %s15, 0
    %p126 = por %p124, %p125
    %p127 = scmp.le.s32.totalorder 1, %s9
    %p128 = scmp.lt.s32.totalorder %s9, 3
    %p129 = pnand %p127, %p128
    %p130 = pneg %p129
    // Predicated region
    $region9: #{external_attention.1} parent=5 // pred_check
      _
    $region10: #{external_attention.1} parent=5 // pred_check_branch
      %132 = sbr.rel (%p129) target = $region12
    $region11: #{external_attention.1} parent=5 // pred_region
      %s133 = ssub.s32 %s9, 1
      // Predicated region
      $region13: #{external_attention.1} parent=11 // pred_check
        %p134 = pneg %p70
      $region14: #{external_attention.1} parent=11 // pred_check_branch
        %136 = sbr.rel (%p134) target = $region16
      $region15: #{external_attention.1} parent=11 // pred_region
        _
      $region16: #{external_attention.1} parent=11 // pred_fallthru
        _
      // Predicated region
      $region17: #{external_attention.1} parent=11 // pred_check
        %p137 = pneg %p91
      $region18: #{external_attention.1} parent=11 // pred_check_branch
        %139 = sbr.rel (%p137) target = $region20
      $region19: #{external_attention.1} parent=11 // pred_region
        _
      $region20: #{external_attention.1} parent=11 // pred_fallthru
        _
    $region12: #{external_attention.1} parent=5 // pred_fallthru
      _
    %p140 = scmp.lt.s32.totalorder %s9, 2
    // Predicated region
    $region21: #{external_attention.1} parent=5 // pred_check
      %p141 = pneg %p140
    $region22: #{external_attention.1} parent=5 // pred_check_branch
      %143 = sbr.rel (%p141) target = $region24
    $region23: #{external_attention.1} parent=5 // pred_region
      // Predicated region
      $region25: #{external_attention.1} parent=23 // pred_check
        %p144 = pneg %p43
      $region26: #{external_attention.1} parent=23 // pred_check_branch
        %146 = sbr.rel (%p144) target = $region28
      $region27: #{external_attention.1} parent=23 // pred_region
        %s147 = smul.u32 2, %s17
        %p148 = scmp.lt.s32.totalorder %s16, 1
        %s149 = scalar_select %p148, %s16, 1
        %p150 = scmp.lt.s32.totalorder %s147, 1
        %s151 = scalar_select %p150, %s147, 1
        %s152 = smul.addr %s149, 2
        %s153 = sadd.s32 %s151, %s152
        %s154 = smul.addr %s153, 4
        %s155 = scalar_lea.vmem %s0, %s154
        %s156 = smul.u32 2, %s17
      $region28: #{external_attention.1} parent=23 // pred_fallthru
        _
    $region24: #{external_attention.1} parent=5 // pred_fallthru
      _
    %p157 = scmp.le.s32.totalorder 1, %s9
    %p158 = scmp.lt.s32.totalorder %s9, 3
    %p159 = pnand %p157, %p158
    %p160 = pneg %p159
    // Predicated region
    $region29: #{external_attention.1} parent=5 // pred_check
      _
    $region30: #{external_attention.1} parent=5 // pred_check_branch
      %162 = sbr.rel (%p159) target = $region32
    $region31: #{external_attention.1} parent=5 // pred_region
      %s163 = ssub.s32 %s9, 1
      %s164 = smul.u32 2, %s19
      %p165 = scmp.lt.s32.totalorder %s18, 1
      %s166 = scalar_select %p165, %s18, 1
      %p167 = scmp.lt.s32.totalorder %s164, 1
      %s168 = scalar_select %p167, %s164, 1
      %s169 = smul.addr %s166, 2
      %s170 = sadd.s32 %s168, %s169
      %s171 = smul.addr %s170, 4
      %s172 = scalar_lea.vmem %s0, %s171
      %p173 = pneg %p49
      %p174 = pneg %p46
      %p175 = pneg %p70
      %p176 = pneg %p67
      %p177 = pneg %p91
      %p178 = pneg %p88
      %p179 = pneg %p119
      %p180 = pneg %p116
      %s181 = smul.u32 2, %s19
      %p182 = scmp.lt.s32.totalorder %s18, 1
      %s183 = scalar_select %p182, %s18, 1
      %p184 = scmp.lt.s32.totalorder %s181, 1
      %s185 = scalar_select %p184, %s181, 1
      %s186 = smul.addr %s183, 2
      %s187 = sadd.s32 %s185, %s186
      %s188 = smul.addr %s187, 4
      %s189 = scalar_lea.vmem %s3, %s188
      %s190 = smul.u32 2, %s19
      %p191 = scmp.lt.s32.totalorder %s18, 1
      %s192 = scalar_select %p191, %s18, 1
      %p193 = scmp.lt.s32.totalorder %s190, 1
      %s194 = scalar_select %p193, %s190, 1
      %s195 = smul.addr %s192, 2
      %s196 = sadd.s32 %s194, %s195
      %s197 = smul.addr %s196, 4
      %s198 = scalar_lea.vmem %s0, %s197
      %s199 = smul.u32 2, %s19
      %s200 = smul.u32 2, %s19
      %p201 = scmp.lt.s32.totalorder %s18, 1
      %s202 = scalar_select %p201, %s18, 1
      %p203 = scmp.lt.s32.totalorder %s200, 1
      %s204 = scalar_select %p203, %s200, 1
      %s205 = smul.addr %s202, 2
      %s206 = sadd.s32 %s204, %s205
      %s207 = smul.addr %s206, 4
      %s208 = scalar_lea.vmem %s3, %s207
      %s209 = smul.u32 2, %s19
      %v210 = vld [vmem:[%s198] sm:$0xff]
      %v211 = vld [vmem:[%s1] sm:$0xff]
      %v212 = vld [vmem:[%s1 + $0x8] sm:$0xff]
      %v213 = vld [vmem:[%s1 + $0x10] sm:$0xff]
      %v214 = vld [vmem:[%s1 + $0x18] sm:$0xff]
      %v215 = vld [vmem:[%s1 + $0x20] sm:$0xff]
      %v216 = vld [vmem:[%s1 + $0x28] sm:$0xff]
      %v217 = vld [vmem:[%s1 + $0x30] sm:$0xff]
      %v218 = vld [vmem:[%s1 + $0x38] sm:$0xff]
      %v219 = vld [vmem:[%s2] sm:$0xf]
      %221 = vst [vmem:[#allocation1] ss:$2 sm:$0xff] %v210
      %v222 = vld.sshfl [vmem:[#allocation1] sm:$0xff pattern:$0x75316420]
      %v223 = vld.sshfl [vmem:[#allocation1 + $0x8] sm:$0xff pattern:$0x75316420]
      %vm224 = vcmask 31744
      %v226 = vsel %vm224, %v211, 0
      %v229 = vsel %vm224, %v212, 0
      %v232 = vsel %vm224, %v213, 0
      %v235 = vsel %vm224, %v214, 0
      %v238 = vsel %vm224, %v215, 0
      %v241 = vsel %vm224, %v216, 0
      %v244 = vsel %vm224, %v217, 0
      %v247 = vsel %vm224, %v218, 0
      %vm249 = vcmask 1043456
      %v250 = vsel %vm249, %v222, 0
      %v252 = vsel %vm249, %v223, 0
      %254 = vmatpush.msra.mxu0 0.0
      %255 = vmatpush.msra.mxu0 0.0
      %256 = vmatpush.msra.mxu0 0.0
      %257 = vmatpush.msra.mxu0 0.0
      %258 = vmatpush.msra.mxu0 0.0
      %259 = vmatpush.msra.mxu0 0.0
      %260 = vmatpush.msra.mxu0 0.0
      %261 = vmatpush.msra.mxu0 0.0
      %262 = vmatpush.msra.mxu0 0.0
      %263 = vmatpush.msra.mxu0 0.0
      %264 = vmatpush.msra.mxu0 0.0
      %265 = vmatpush.msra.mxu0 0.0
      %266 = vmatpush.msra.mxu0 0.0
      %267 = vmatpush.msra.mxu0 0.0
      %268 = vmatpush.msra.mxu0 0.0
      %269 = vmatpush.msra.mxu0 %v250
      %270 = vmatmul.f32.gmra.mxu0 %v226
      %v271 = vpop.f32.mrf.mxu0
      %v272 = vadd.f32 0.0, %v271
      %273 = vmatmul.f32.gmra.mxu0 %v229
      %v274 = vpop.f32.mrf.mxu0
      %v275 = vadd.f32 0.0, %v274
      %276 = vmatmul.f32.gmra.mxu0 %v232
      %v277 = vpop.f32.mrf.mxu0
      %v278 = vadd.f32 0.0, %v277
      %279 = vmatmul.f32.gmra.mxu0 %v235
      %v280 = vpop.f32.mrf.mxu0
      %v281 = vadd.f32 0.0, %v280
      %282 = vmatmul.f32.gmra.mxu0 %v238
      %v283 = vpop.f32.mrf.mxu0
      %v284 = vadd.f32 0.0, %v283
      %285 = vmatmul.f32.gmra.mxu0 %v241
      %v286 = vpop.f32.mrf.mxu0
      %v287 = vadd.f32 0.0, %v286
      %288 = vmatmul.f32.gmra.mxu0 %v244
      %v289 = vpop.f32.mrf.mxu0
      %v290 = vadd.f32 0.0, %v289
      %291 = vmatmul.f32.gmra.mxu0 %v247
      %v292 = vpop.f32.mrf.mxu0
      %v293 = vadd.f32 0.0, %v292
      %294 = vdwg.mxu0
      %295 = vmatpush.msra.mxu0 0.0
      %296 = vmatpush.msra.mxu0 0.0
      %297 = vmatpush.msra.mxu0 0.0
      %298 = vmatpush.msra.mxu0 0.0
      %299 = vmatpush.msra.mxu0 0.0
      %300 = vmatpush.msra.mxu0 0.0
      %301 = vmatpush.msra.mxu0 0.0
      %302 = vmatpush.msra.mxu0 0.0
      %303 = vmatpush.msra.mxu0 0.0
      %304 = vmatpush.msra.mxu0 0.0
      %305 = vmatpush.msra.mxu0 0.0
      %306 = vmatpush.msra.mxu0 0.0
      %307 = vmatpush.msra.mxu0 0.0
      %308 = vmatpush.msra.mxu0 0.0
      %309 = vmatpush.msra.mxu0 0.0
      %310 = vmatpush.msra.mxu0 %v252
      %311 = vmatmul.f32.gmra.mxu0 %v226
      %v312 = vpop.f32.mrf.mxu0
      %v313 = vadd.f32 0.0, %v312
      %314 = vmatmul.f32.gmra.mxu0 %v229
      %v315 = vpop.f32.mrf.mxu0
      %v316 = vadd.f32 0.0, %v315
      %317 = vmatmul.f32.gmra.mxu0 %v232
      %v318 = vpop.f32.mrf.mxu0
      %v319 = vadd.f32 0.0, %v318
      %320 = vmatmul.f32.gmra.mxu0 %v235
      %v321 = vpop.f32.mrf.mxu0
      %v322 = vadd.f32 0.0, %v321
      %323 = vmatmul.f32.gmra.mxu0 %v238
      %v324 = vpop.f32.mrf.mxu0
      %v325 = vadd.f32 0.0, %v324
      %326 = vmatmul.f32.gmra.mxu0 %v241
      %v327 = vpop.f32.mrf.mxu0
      %v328 = vadd.f32 0.0, %v327
      %329 = vmatmul.f32.gmra.mxu0 %v244
      %v330 = vpop.f32.mrf.mxu0
      %v331 = vadd.f32 0.0, %v330
      %332 = vmatmul.f32.gmra.mxu0 %v247
      %v333 = vpop.f32.mrf.mxu0
      %v334 = vadd.f32 0.0, %v333
      %335 = vdwg.mxu0
      %v336 = vmax.f32 %v272, %v278
      %v337 = vmax.f32 %v275, %v281
      %v338 = vmax.f32 %v336, %v284
      %v339 = vmax.f32 %v337, %v287
      %v340 = vmax.f32 %v338, %v290
      %v341 = vmax.f32 %v339, %v293
      %v342 = vmax.f32 %v340, %v341
      %v343 = vrot.slane %v342, 4
      %v344 = vmax.f32 %v342, %v343
      %v345 = vrot.slane %v344, 2
      %v346 = vmax.f32 %v344, %v345
      %v347 = vrot.slane %v346, 1
      %v348 = vmax.f32 %v346, %v347
      %v349 = vmax.f32 %v313, %v319
      %v350 = vmax.f32 %v316, %v322
      %v351 = vmax.f32 %v349, %v325
      %v352 = vmax.f32 %v350, %v328
      %v353 = vmax.f32 %v351, %v331
      %v354 = vmax.f32 %v352, %v334
      %v355 = vmax.f32 %v353, %v354
      %v356 = vrot.slane %v355, 4
      %v357 = vmax.f32 %v355, %v356
      %v358 = vrot.slane %v357, 2
      %v359 = vmax.f32 %v357, %v358
      %v360 = vrot.slane %v359, 1
      %v361 = vmax.f32 %v359, %v360
      %v362 = vsub.f32 %v272, %v348
      %v363 = vsub.f32 %v313, %v361
      %v364 = vsub.f32 %v275, %v348
      %v365 = vsub.f32 %v316, %v361
      %v366 = vsub.f32 %v278, %v348
      %v367 = vsub.f32 %v319, %v361
      %v368 = vsub.f32 %v281, %v348
      %v369 = vsub.f32 %v322, %v361
      %v370 = vsub.f32 %v284, %v348
      %v371 = vsub.f32 %v325, %v361
      %v372 = vsub.f32 %v287, %v348
      %v373 = vsub.f32 %v328, %v361
      %v374 = vsub.f32 %v290, %v348
      %v375 = vsub.f32 %v331, %v361
      %v376 = vsub.f32 %v293, %v348
      %v377 = vsub.f32 %v334, %v361
      %v378 = vmul.f32 %v362, 1.442695
      %v379 = vpow.pop %v378
      %v380 = vmul.f32 %v363, 1.442695
      %v381 = vpow.pop %v380
      %v382 = vmul.f32 %v364, 1.442695
      %v383 = vpow.pop %v382
      %v384 = vmul.f32 %v365, 1.442695
      %v385 = vpow.pop %v384
      %v386 = vmul.f32 %v366, 1.442695
      %v387 = vpow.pop %v386
      %v388 = vmul.f32 %v367, 1.442695
      %v389 = vpow.pop %v388
      %v390 = vmul.f32 %v368, 1.442695
      %v391 = vpow.pop %v390
      %v392 = vmul.f32 %v369, 1.442695
      %v393 = vpow.pop %v392
      %v394 = vmul.f32 %v370, 1.442695
      %v395 = vpow.pop %v394
      %v396 = vmul.f32 %v371, 1.442695
      %v397 = vpow.pop %v396
      %v398 = vmul.f32 %v372, 1.442695
      %v399 = vpow.pop %v398
      %v400 = vmul.f32 %v373, 1.442695
      %v401 = vpow.pop %v400
      %v402 = vmul.f32 %v374, 1.442695
      %v403 = vpow.pop %v402
      %v404 = vmul.f32 %v375, 1.442695
      %v405 = vpow.pop %v404
      %v406 = vmul.f32 %v376, 1.442695
      %v407 = vpow.pop %v406
      %v408 = vmul.f32 %v377, 1.442695
      %v409 = vpow.pop %v408
      %v410 = vadd.f32 %v379, %v383
      %v411 = vadd.f32 %v410, %v387
      %v412 = vadd.f32 %v411, %v391
      %v413 = vadd.f32 %v412, %v395
      %v414 = vadd.f32 %v413, %v399
      %v415 = vadd.f32 %v414, %v403
      %v416 = vadd.f32 %v415, %v407
      %v417 = vrot.slane %v416, 4
      %v418 = vadd.f32 %v416, %v417
      %v419 = vrot.slane %v418, 2
      %v420 = vadd.f32 %v418, %v419
      %v421 = vrot.slane %v420, 1
      %v422 = vadd.f32 %v420, %v421
      %v423 = vadd.f32 %v381, %v385
      %v424 = vadd.f32 %v423, %v389
      %v425 = vadd.f32 %v424, %v393
      %v426 = vadd.f32 %v425, %v397
      %v427 = vadd.f32 %v426, %v401
      %v428 = vadd.f32 %v427, %v405
      %v429 = vadd.f32 %v428, %v409
      %v430 = vrot.slane %v429, 4
      %v431 = vadd.f32 %v429, %v430
      %v432 = vrot.slane %v431, 2
      %v433 = vadd.f32 %v431, %v432
      %v434 = vrot.slane %v433, 1
      %v435 = vadd.f32 %v433, %v434
      %v436 = vrcp.pop %v422
      %v437 = vrcp.pop %v435
      %v438 = vmul.f32 %v379, %v436
      %v439 = vmul.f32 %v381, %v437
      %v440 = vmul.f32 %v383, %v436
      %v441 = vmul.f32 %v385, %v437
      %v442 = vmul.f32 %v387, %v436
      %v443 = vmul.f32 %v389, %v437
      %v444 = vmul.f32 %v391, %v436
      %v445 = vmul.f32 %v393, %v437
      %v446 = vmul.f32 %v395, %v436
      %v447 = vmul.f32 %v397, %v437
      %v448 = vmul.f32 %v399, %v436
      %v449 = vmul.f32 %v401, %v437
      %v450 = vmul.f32 %v403, %v436
      %v451 = vmul.f32 %v405, %v437
      %v452 = vmul.f32 %v407, %v436
      %v453 = vmul.f32 %v409, %v437
      %vm454 = vcmask 523264
      %v456 = vsel %vm454, %v219, 0
      %458 = vmatpush.msra.mxu0 0.0
      %459 = vmatpush.msra.mxu0 0.0
      %460 = vmatpush.msra.mxu0 0.0
      %461 = vmatpush.msra.mxu0 0.0
      %462 = vmatpush.msra.mxu0 0.0
      %463 = vmatpush.msra.mxu0 0.0
      %464 = vmatpush.msra.mxu0 0.0
      %465 = vmatpush.msra.mxu0 0.0
      %466 = vmatpush.msra.mxu0 %v452
      %467 = vmatpush.msra.mxu0 %v450
      %468 = vmatpush.msra.mxu0 %v448
      %469 = vmatpush.msra.mxu0 %v446
      %470 = vmatpush.msra.mxu0 %v444
      %471 = vmatpush.msra.mxu0 %v442
      %472 = vmatpush.msra.mxu0 %v440
      %473 = vmatpush.msra.mxu0 %v438
      %474 = vmatmul.f32.gmra.mxu0 %v456
      %v475 = vpop.f32.mrf.mxu0
      %v476 = vadd.f32 0.0, %v475
      %477 = vdwg.mxu0
      %478 = vmatpush.msra.mxu0 0.0
      %479 = vmatpush.msra.mxu0 0.0
      %480 = vmatpush.msra.mxu0 0.0
      %481 = vmatpush.msra.mxu0 0.0
      %482 = vmatpush.msra.mxu0 0.0
      %483 = vmatpush.msra.mxu0 0.0
      %484 = vmatpush.msra.mxu0 0.0
      %485 = vmatpush.msra.mxu0 0.0
      %486 = vmatpush.msra.mxu0 %v453
      %487 = vmatpush.msra.mxu0 %v451
      %488 = vmatpush.msra.mxu0 %v449
      %489 = vmatpush.msra.mxu0 %v447
      %490 = vmatpush.msra.mxu0 %v445
      %491 = vmatpush.msra.mxu0 %v443
      %492 = vmatpush.msra.mxu0 %v441
      %493 = vmatpush.msra.mxu0 %v439
      %494 = vmatmul.f32.gmra.mxu0 %v456
      %v495 = vpop.f32.mrf.mxu0
      %v496 = vadd.f32 0.0, %v495
      %497 = vdwg.mxu0
      %v500 = vrot.slane %v496, 4
      %v501 = vsel %vm249, %v476, %v500
      %503 = vst [vmem:[%s208] sm:$0xff] %v501
      %s504 = smul.u32 2, %s19
      %p505 = scmp.lt.s32.totalorder %s18, 1
      %s506 = scalar_select %p505, %s18, 1
      %p507 = scmp.lt.s32.totalorder %s504, 1
      %s508 = scalar_select %p507, %s504, 1
      %s509 = smul.addr %s506, 2
      %s510 = sadd.s32 %s508, %s509
      %s511 = smul.addr %s510, 4
      %s512 = scalar_lea.vmem %s3, %s511
      // Predicated region
      $region33: #{external_attention.1} parent=31 // pred_check
        %p513 = pneg %p116
      $region34: #{external_attention.1} parent=31 // pred_check_branch
        %515 = sbr.rel (%p513) target = $region36
      $region35: #{external_attention.1} parent=31 // pred_region
        %s516 = smul.u32 2, %s19
      $region36: #{external_attention.1} parent=31 // pred_fallthru
        _
    $region32: #{external_attention.1} parent=5 // pred_fallthru
      _
    %p517 = scmp.le.s32.totalorder 2, %s9
    // Predicated region
    $region37: #{external_attention.1} parent=5 // pred_check
      %p518 = pneg %p517
    $region38: #{external_attention.1} parent=5 // pred_check_branch
      %520 = sbr.rel (%p518) target = $region40
    $region39: #{external_attention.1} parent=5 // pred_region
      %s521 = ssub.s32 %s9, 2
      // Predicated region
      $region41: #{external_attention.1} parent=39 // pred_check
        %p522 = pneg %p122
      $region42: #{external_attention.1} parent=39 // pred_check_branch
        %524 = sbr.rel (%p522) target = $region44
      $region43: #{external_attention.1} parent=39 // pred_region
        %s525 = smul.u32 2, %s21
        %p526 = scmp.lt.s32.totalorder %s20, 1
        %s527 = scalar_select %p526, %s20, 1
        %p528 = scmp.lt.s32.totalorder %s525, 1
        %s529 = scalar_select %p528, %s525, 1
        %s530 = smul.addr %s527, 2
        %s531 = sadd.s32 %s529, %s530
        %s532 = smul.addr %s531, 4
        %s533 = scalar_lea.vmem %s3, %s532
      $region44: #{external_attention.1} parent=39 // pred_fallthru
        _
    $region40: #{external_attention.1} parent=5 // pred_fallthru
      _
  $region6: #{external_attention.1} parent=0 // loop_footer
    %s13 = sadd.s32 1, %s9
  $region7: #{external_attention.1} parent=0 // loop_footer_branch
    %8 = sbr.rel target = $region3
  $region8: #{external_attention.1} parent=0 // loop_exit
    _

</llo_original>
